<compile_context>
chip_gen: v7x
topology: tpu7x:2x2x1
jax: 0.10.0
libtpu: 0.0.40
codegen_flags: <defaults>
</compile_context>

<pallas_src>
import functools

import jax
import jax.numpy as jnp
from jax import lax
from jax.experimental import pallas as pl
from jax.experimental.pallas import tpu as pltpu


def _round_up(x, m):
    return ((x + m - 1) // m) * m


def _vmem_plan():
    """(vmem_limit_bytes, tile_budget_bytes, vmem_capacity) for this chip."""
    try:
        cap = int(pltpu.get_tpu_info().vmem_capacity_bytes)
    except Exception:
        cap = 64 << 20  # conservative (v7x-sized) fallback
    if cap >= (128 << 20):          # v5e / v6e: 128 MiB physical
        return 64 << 20, 48 << 20, cap
    return 40 << 20, 24 << 20, cap  # v7x: 64 MiB physical


def _inorm_kernel(*refs, eps, hw, activation, has_residual):
    # refs: x (row_tile, HW), w (row_tile, 1), b (row_tile, 1),
    #       [residual (row_tile, HW)], out (row_tile, HW)
    if has_residual:
        x_ref, w_ref, b_ref, res_ref, o_ref = refs
    else:
        x_ref, w_ref, b_ref, o_ref = refs
        res_ref = None

    x = x_ref[...].astype(jnp.float32)
    inv_n = jnp.float32(1.0 / hw)
    # Single-pass statistics; block spans the full HW extent so no lane mask is
    # needed. Garbage rows of a partial final block only poison their own rows
    # (row-wise op) and their stores are masked by Pallas.
    mean = jnp.sum(x, axis=-1, keepdims=True) * inv_n
    ex2 = jnp.sum(x * x, axis=-1, keepdims=True) * inv_n
    var = jnp.maximum(ex2 - mean * mean, 0.0)      # biased variance, clamped
    inv_std = lax.rsqrt(var + eps)

    w = w_ref[...].astype(jnp.float32)
    b = b_ref[...].astype(jnp.float32)
    # Fold affine into the narrow (row_tile, 1) column -> single full-width FMA.
    scale = inv_std * w
    shift = b - mean * scale
    y = x * scale + shift
    if activation == "elu":
        y = jnp.where(y > 0, y, jnp.exp(y) - 1.0)  # ELU(alpha=1)
    if has_residual:
        y = y + res_ref[...].astype(jnp.float32)
    o_ref[...] = y.astype(o_ref.dtype)


def adaptive_instance_norm_2d(x, weight=None, bias=None, *, residual=None,
                              eps=1e-5, activation="none"):
    """x: (B, C, H, W); weight/bias: (B*C,) or None (InstanceNorm2d affine=False).

    If `residual` (same shape as x) is given, it is added after norm/activation
    (fused epilogue for the ResBlock skip connection).
    """
    B, C, H, W = x.shape
    BC, HW = B * C, H * W
    dtype = x.dtype
    itemsize = jnp.dtype(dtype).itemsize
    has_res = residual is not None

    if weight is None:
        weight = jnp.ones((BC,), jnp.float32)
    if bias is None:
        bias = jnp.zeros((BC,), jnp.float32)
    assert weight.shape == (BC,) and bias.shape == (BC,)
    if has_res:
        assert residual.shape == x.shape

    vmem_limit, tile_budget, vmem_cap = _vmem_plan()

    # Sublane packing for the row (instance) dim: 8 f32 / 16 bf16 / 32 int8.
    pack = 8 * max(1, 4 // itemsize)

    # Largest row tile whose pipelined blocks (x up to triple-buffered,
    # out / residual double-buffered, (row_tile,1) w/b slivers lane-padded to
    # 128) plus ~8 B/elem of f32 temporaries fit the tile budget.
    per_elem = (3 + 2 + (2 if has_res else 0)) * itemsize + 8
    bytes_per_row = HW * per_elem + 2 * 2 * 128 * 4   # + w/b block footprint
    max_rows = max(pack, tile_budget // max(1, bytes_per_row))
    row_tile = (max_rows // pack) * pack
    row_tile = min(row_tile, _round_up(BC, pack))
    if BC > pack:
        # Keep >= 4 grid steps when possible (2 TCs on v7x x double buffering).
        row_tile = min(row_tile, max(pack, _round_up(pl.cdiv(BC, 4), pack)))
    row_tile = max(row_tile, pack)

    grid = (pl.cdiv(BC, row_tile),)   # partial final block handled by Pallas

    x2 = x.reshape(BC, HW)            # pure reshape: no HBM copy
    w2 = weight.reshape(BC, 1).astype(jnp.float32)
    b2 = bias.reshape(BC, 1).astype(jnp.float32)

    # Deeper buffering for the x stream on big-VMEM chips with small blocks.
    x_spec = pl.BlockSpec((row_tile, HW), lambda i: (i, 0))
    x_block_bytes = row_tile * HW * itemsize
    if (vmem_cap >= (128 << 20) and x_block_bytes < (1 << 20)
            and grid[0] >= 3 and hasattr(pl, "Buffered")):
        try:
            x_spec = pl.BlockSpec((row_tile, HW), lambda i: (i, 0),
                                  pipeline_mode=pl.Buffered(3))
        except TypeError:
            pass  # older BlockSpec signature: fall back to default buffering

    in_specs = [
        x_spec,
        pl.BlockSpec((row_tile, 1), lambda i: (i, 0)),   # per-step w sliver
        pl.BlockSpec((row_tile, 1), lambda i: (i, 0)),   # per-step b sliver
    ]
    inputs = [x2, w2, b2]
    if has_res:
        in_specs.append(pl.BlockSpec((row_tile, HW), lambda i: (i, 0)))
        inputs.append(residual.reshape(BC, HW))

    kernel = functools.partial(_inorm_kernel, eps=float(eps), hw=HW,
                               activation=activation, has_residual=has_res)

    flops_per_elem = 6 + (3 if activation == "elu" else 0) + (1 if has_res else 0)
    cost = pl.CostEstimate(
        flops=flops_per_elem * BC * HW,
        transcendentals=BC + (BC * HW if activation == "elu" else 0),
        bytes_accessed=(2 + (1 if has_res else 0)) * BC * HW * itemsize
                       + 2 * BC * 4,
    )

    out2 = pl.pallas_call(
        kernel,
        out_shape=jax.ShapeDtypeStruct((BC, HW), dtype),
        grid_spec=pltpu.PrefetchScalarGridSpec(
            num_scalar_prefetch=0,
            grid=grid,
            in_specs=in_specs,
            out_specs=pl.BlockSpec((row_tile, HW), lambda i: (i, 0)),
        ),
        compiler_params=pltpu.CompilerParams(
            dimension_semantics=("parallel",),
            vmem_limit_bytes=vmem_limit,
        ),
        cost_estimate=cost,
    )(*inputs)

    return out2.reshape(B, C, H, W)


# ---------------- ResBlock forward (norm='in', activation='elu', stride=1) ----
# TODO(synk): the 3x3 convolutions are left to XLA (lax.conv_general_dilated);
# an NHWC end-to-end layout (MXU-friendly) with an (HW_tile, C)-tiled IN kernel
# would avoid transposes but is a larger structural change.

def _conv2d_nchw(x, w, b=None, stride=1, padding=1):
    y = lax.conv_general_dilated(
        x, w, window_strides=(stride, stride),
        padding=((padding, padding), (padding, padding)),
        dimension_numbers=("NCHW", "OIHW", "NCHW"))
    if b is not None:
        y = y + b.reshape(1, -1, 1, 1)
    return y


def res_block_forward(x, params, *, eps=1e-5):
    # ResBlock(dim, dim, norm='in', activation='elu'): convolve_res=False.
    # A per-channel conv bias right before instance norm is a mathematical
    # no-op (the per-(b,c) mean subtraction cancels it), so b1/b2 are skipped.
    h = _conv2d_nchw(x, params["w1"])                              # bias dropped
    h = adaptive_instance_norm_2d(h, eps=eps, activation="elu")    # IN + ELU fused
    h = _conv2d_nchw(h, params["w2"])                              # bias dropped
    # Second IN with the residual add fused into the same memory-bound pass.
    return adaptive_instance_norm_2d(h, eps=eps, activation="none", residual=x)


# ---------------- pure-JAX references -----------------------------------------

def _inorm_ref(x, weight=None, bias=None, eps=1e-5, activation="none"):
    B, C, H, W = x.shape
    xr = x.reshape(B * C, H * W).astype(jnp.float32)
    mean = xr.mean(-1, keepdims=True)
    var = ((xr - mean) ** 2).mean(-1, keepdims=True)
    y = (xr - mean) / jnp.sqrt(var + eps)
    if weight is not None:
        y = y * weight[:, None] + bias[:, None]
    if activation == "elu":
        y = jnp.where(y > 0, y, jnp.exp(y) - 1.0)
    return y.reshape(B, C, H, W).astype(x.dtype)


def _res_block_ref(x, params, eps=1e-5):
    # Reference keeps the conv bias adds (as PyTorch does) — they cancel in IN.
    residual = x
    h = _conv2d_nchw(x, params["w1"], params["b1"])
    h = _inorm_ref(h, eps=eps, activation="elu")
    h = _conv2d_nchw(h, params["w2"], params["b2"])
    h = _inorm_ref(h, eps=eps)
    return h + residual


if __name__ == "__main__":
    B, C, H, W = 2, 4, 16, 16
    key = jax.random.PRNGKey(0)
    kx, kw, kb, k1, k2, kb1, kb2 = jax.random.split(key, 7)

    x = jax.random.normal(kx, (B, C, H, W), dtype=jnp.float32)

    # 1) AdaptiveInstanceNorm2d path (norm='adain'): per-(b,c) affine params.
    adain_weight = 1.0 + 0.1 * jax.random.normal(kw, (B * C,), dtype=jnp.float32)
    adain_bias = 0.1 * jax.random.normal(kb, (B * C,), dtype=jnp.float32)
    out = jax.block_until_ready(
        adaptive_instance_norm_2d(x, adain_weight, adain_bias, eps=1e-5))
    ref = _inorm_ref(x, adain_weight, adain_bias, eps=1e-5)
    assert out.shape == (B, C, H, W)
    assert jnp.allclose(out, ref, atol=1e-4, rtol=1e-4), "AdaIN mismatch vs reference"

    # 2) ResBlock(dim, dim, norm='in', activation='elu', stride=1) forward.
    params = {
        "w1": 0.1 * jax.random.normal(k1, (C, C, 3, 3), dtype=jnp.float32),
        "b1": 0.1 * jax.random.normal(kb1, (C,), dtype=jnp.float32),
        "w2": 0.1 * jax.random.normal(k2, (C, C, 3, 3), dtype=jnp.float32),
        "b2": 0.1 * jax.random.normal(kb2, (C,), dtype=jnp.float32),
    }
    rb_out = jax.block_until_ready(res_block_forward(x, params))
    rb_ref = _res_block_ref(x, params)
    assert rb_out.shape == (B, C, H, W)
    assert jnp.allclose(rb_out, rb_ref, atol=1e-4, rtol=1e-4), "ResBlock mismatch vs reference"

    print("KERNEL_OK")
</pallas_src>

<mosaic_0001>
module attributes {stable_mosaic.version = 11 : i64} {
  func.func @_inorm_kernel(%arg0: i32, %arg1: memref<8x256xf32, #tpu.memory_space<vmem>>, %arg2: memref<8x1xf32, #tpu.memory_space<vmem>>, %arg3: memref<8x1xf32, #tpu.memory_space<vmem>>, %arg4: memref<8x256xf32, #tpu.memory_space<vmem>>) attributes {dimension_semantics = [#tpu.dimension_semantics<parallel>], iteration_bounds = array<i64: 1>, scalar_prefetch = 0 : i64, scratch_operands = 0 : i64, tpu.core_type = #tpu.core_type<tc>, window_params = [{transform_indices = @transform_0, window_bounds = array<i64: 8, 256>}, {transform_indices = @transform_1, window_bounds = array<i64: 8, 1>}, {transform_indices = @transform_2, window_bounds = array<i64: 8, 1>}, {transform_indices = @transform_3, window_bounds = array<i64: 8, 256>}]} {
    %c0 = arith.constant 0 : index
    %c0_0 = arith.constant 0 : index
    %0 = vector.load %arg1[%c0, %c0_0] : memref<8x256xf32, #tpu.memory_space<vmem>>, vector<8x256xf32>
    %cst = arith.constant dense<0.000000e+00> : vector<8xf32>
    %1 = vector.multi_reduction <add>, %0, %cst [1] : vector<8x256xf32> to vector<8xf32>
    %2 = vector.shape_cast %1 : vector<8xf32> to vector<8x1xf32>
    %cst_1 = arith.constant 3.906250e-03 : f32
    %3 = vector.broadcast %cst_1 : f32 to vector<8x1xf32>
    %4 = arith.mulf %2, %3 : vector<8x1xf32>
    %5 = arith.mulf %0, %0 : vector<8x256xf32>
    %cst_2 = arith.constant dense<0.000000e+00> : vector<8xf32>
    %6 = vector.multi_reduction <add>, %5, %cst_2 [1] : vector<8x256xf32> to vector<8xf32>
    %7 = vector.shape_cast %6 : vector<8xf32> to vector<8x1xf32>
    %cst_3 = arith.constant 3.906250e-03 : f32
    %8 = vector.broadcast %cst_3 : f32 to vector<8x1xf32>
    %9 = arith.mulf %7, %8 : vector<8x1xf32>
    %10 = arith.mulf %4, %4 : vector<8x1xf32>
    %11 = arith.subf %9, %10 : vector<8x1xf32>
    %cst_4 = arith.constant 0.000000e+00 : f32
    %12 = vector.broadcast %cst_4 : f32 to vector<8x1xf32>
    %13 = arith.maximumf %11, %12 : vector<8x1xf32>
    %cst_5 = arith.constant 9.99999974E-6 : f32
    %14 = vector.broadcast %cst_5 : f32 to vector<8x1xf32>
    %15 = arith.addf %13, %14 : vector<8x1xf32>
    %16 = math.rsqrt %15 : vector<8x1xf32>
    %c0_6 = arith.constant 0 : index
    %c0_7 = arith.constant 0 : index
    %17 = vector.load %arg2[%c0_6, %c0_7] : memref<8x1xf32, #tpu.memory_space<vmem>>, vector<8x1xf32>
    %c0_8 = arith.constant 0 : index
    %c0_9 = arith.constant 0 : index
    %18 = vector.load %arg3[%c0_8, %c0_9] : memref<8x1xf32, #tpu.memory_space<vmem>>, vector<8x1xf32>
    %19 = arith.mulf %16, %17 : vector<8x1xf32>
    %20 = arith.mulf %4, %19 : vector<8x1xf32>
    %21 = arith.subf %18, %20 : vector<8x1xf32>
    %22 = vector.broadcast %19 : vector<8x1xf32> to vector<8x256xf32>
    %23 = arith.mulf %0, %22 : vector<8x256xf32>
    %24 = vector.broadcast %21 : vector<8x1xf32> to vector<8x256xf32>
    %25 = arith.addf %23, %24 : vector<8x256xf32>
    %c0_10 = arith.constant 0 : index
    %c0_11 = arith.constant 0 : index
    %26 = vector.load %arg4[%c0_10, %c0_11] : memref<8x256xf32, #tpu.memory_space<vmem>>, vector<8x256xf32>
    tpu.vector_store %arg4[%c0_10, %c0_11], %25 {strides = array<i32>} : memref<8x256xf32, #tpu.memory_space<vmem>>, vector<8x256xf32>,
    return
  }
  func.func @transform_0(%arg0: i32) -> (i32, i32) {
    %c0_i32 = arith.constant 0 : i32
    %c0_i32_0 = arith.constant 0 : i32
    return %arg0, %c0_i32 : i32, i32
  }
  func.func @transform_1(%arg0: i32) -> (i32, i32) {
    %c0_i32 = arith.constant 0 : i32
    %c0_i32_0 = arith.constant 0 : i32
    return %arg0, %c0_i32 : i32, i32
  }
  func.func @transform_2(%arg0: i32) -> (i32, i32) {
    %c0_i32 = arith.constant 0 : i32
    %c0_i32_0 = arith.constant 0 : i32
    return %arg0, %c0_i32 : i32, i32
  }
  func.func @transform_3(%arg0: i32) -> (i32, i32) {
    %c0_i32 = arith.constant 0 : i32
    %c0_i32_0 = arith.constant 0 : i32
    return %arg0, %c0_i32 : i32, i32
  }
}

</mosaic_0001>

<llo_original>
// kernel: tpu_custom_call.1
$region0: #{tpu_custom_call.1}
  #allocation0 [shape = 'u32[]', space=smem, size = 0x4, offset = 0x4, fixed_abs, tag = 'smem constant byte address 0x4 - core index']
  #allocation1 [shape = 'u32[144,128]{1,0:T(1,128)}', space=vmem, size = 0x12000, scoped, tag = 'internal scratch']
  %s0 = inlined_call_operand.vmem [shape: f32[8,256], index: 0, kind: input, shape index: {}]
  %s1 = inlined_call_operand.vmem [shape: f32[8,1], index: 1, kind: input, shape index: {}]
  %s2 = inlined_call_operand.vmem [shape: f32[8,1], index: 2, kind: input, shape index: {}]
  %s3 = inlined_call_operand.hbm [shape: f32[8,256], index: 3, kind: output, shape index: {}]
  %s4 = sld [smem:[#allocation0]]
  $region22: #{tpu_custom_call.1} parent=0
    _
  %s6 = ssub.s32 1, %s4
  %s7 = scalar_select 0, %s6, %s4
  $region1: #{tpu_custom_call.1} parent=0
    #allocation2 [shape = 'u8[8192]{0}', space=vmem, size = 0x2000, scoped, tag = 'output window, operand 0, single buffered']
    #allocation3 [shape = 's32[1]{0}', space=sflag, size = 0x4, scoped, tag = 'scoped memory for tpu_custom_call.1']
    %8 = vsyncpa [#allocation3], 0
    // Predicated region
    $region2: #{tpu_custom_call.1} parent=1 // pred_check
      _
    $region3: #{tpu_custom_call.1} parent=1 // pred_check_branch
      %10 = sbr.rel (0) target = $region5
    $region4: #{tpu_custom_call.1} parent=1 // pred_region
      _
    $region5: #{tpu_custom_call.1} parent=1 // pred_fallthru
      _
    // Predicated region
    $region6: #{tpu_custom_call.1} parent=1 // pred_check
      _
    $region7: #{tpu_custom_call.1} parent=1 // pred_check_branch
      %12 = sbr.rel (0) target = $region9
    $region8: #{tpu_custom_call.1} parent=1 // pred_region
      _
    $region9: #{tpu_custom_call.1} parent=1 // pred_fallthru
      _
    // Predicated region
    $region10: #{tpu_custom_call.1} parent=1 // pred_check
      _
    $region11: #{tpu_custom_call.1} parent=1 // pred_check_branch
      %14 = sbr.rel (0) target = $region13
    $region12: #{tpu_custom_call.1} parent=1 // pred_region
      _
    $region13: #{tpu_custom_call.1} parent=1 // pred_fallthru
      _
    %v15 = vld [vmem:[%s0] sm:$0xff]
    %v16 = vld [vmem:[%s0 + $0x8] sm:$0xff]
    %v17 = vadd.f32 %v15, %v16
    %18 = vadd.xlane.f32.xlu0 %v17
    %v19 = vpop.xlane.xlu0 %18
    %v20 = vmul.f32 %v19, 0.00390625
    %v21 = vmul.f32 %v15, %v15
    %v22 = vmul.f32 %v16, %v16
    %v23 = vadd.f32 %v21, %v22
    %24 = vadd.xlane.f32.xlu0 %v23
    %v25 = vpop.xlane.xlu0 %24
    %v26 = vmul.f32 %v25, 0.00390625
    %v27 = vmul.f32 %v20, %v20
    %v28 = vsub.f32 %v26, %v27
    %v29 = vmax.f32 %v28, 0.0
    %v30 = vadd.f32 %v29, 1e-05
    %v31 = vrsqrt.pop %v30
    %v32 = vld [vmem:[%s1] sm:$0xff]
    %v33 = vld [vmem:[%s2] sm:$0xff]
    %v34 = vmul.f32 %v31, %v32
    %v35 = vmul.f32 %v20, %v34
    %v36 = vsub.f32 %v33, %v35
    %38 = vset.pattern.permute.xlu0 0
    %39 = vperm.xlu0 %38, %v34
    %v40 = vpop.permute.xlu0 %39
    %v42 = vmul.f32 %v15, %v40
    %v43 = vmul.f32 %v16, %v40
    %45 = vset.pattern.permute.xlu0 0
    %46 = vperm.xlu0 %45, %v36
    %v47 = vpop.permute.xlu0 %46
    %v49 = vadd.f32 %v42, %v47
    %v50 = vadd.f32 %v43, %v47
    %51 = vst [vmem:[#allocation2] sm:$0xff] %v49
    %52 = vst [vmem:[#allocation2 + $0x8] sm:$0xff] %v50
    // Predicated region
    $region14: #{tpu_custom_call.1} parent=1 // pred_check
      _
    $region15: #{tpu_custom_call.1} parent=1 // pred_check_branch
      %54 = sbr.rel (0) target = $region17
    $region16: #{tpu_custom_call.1} parent=1 // pred_region
      %s56 = ssub.s32 256, 256
      %57 = vsyncadd [#allocation3], %s56
      %s59 = sshll.u32 [#allocation2], 4
      %s60 = int_to_ptr.vmem [resolvable:$true] %s59
      %62 = dma.vmem_to_hbm [thread:$0]  %s60, 256, %s3, [#allocation3]
    $region17: #{tpu_custom_call.1} parent=1 // pred_fallthru
      _
    // Predicated region
    $region18: #{tpu_custom_call.1} parent=1 // pred_check
      _
    $region19: #{tpu_custom_call.1} parent=1 // pred_check_branch
      %64 = sbr.rel (0) target = $region21
    $region20: #{tpu_custom_call.1} parent=1 // pred_region
      %65 = dma.done [#allocation3], 256
    $region21: #{tpu_custom_call.1} parent=1 // pred_fallthru
      _
    %66 = vsyncpa [#allocation3], 1

</llo_original>
